<compile_context>
chip_gen: v5e
topology: v5e:2x2
jax: 0.10.0
libtpu: 0.0.40
codegen_flags: <defaults>
</compile_context>

<pallas_src>
import math

import jax
import jax.numpy as jnp
import numpy as np
from jax.experimental import pallas as pl
from jax.experimental.pallas import tpu as pltpu


# ----------------------------------------------------------------------------
# exact entmax-1.5 across a list of n same-shape (R, M) slabs (the
# normalization axis is the *list index*).  Reproduces the entmax package's
# sorted-cumsum threshold algorithm exactly, sort-free: the k-th largest value
# per column is extracted by repeated masked max with lowest-slab-index
# tie-breaking.  Every op is a full (R, M) VPU op (batched over query heads).
# ----------------------------------------------------------------------------
def _entmax15_over_slabs(slabs):
    n = len(slabs)
    mx = slabs[0]
    for j in range(1, n):
        mx = jnp.maximum(mx, slabs[j])
    z = [(s - mx) * 0.5 for s in slabs]

    rem = list(z)
    run_sum = jnp.zeros_like(mx)
    run_sq = jnp.zeros_like(mx)
    tau_star = jnp.zeros_like(mx)
    neg_big = jnp.float32(-1e30)          # safe: z <= 0 after the max shift
    for k in range(1, n + 1):
        m = rem[0]
        for j in range(1, n):
            m = jnp.maximum(m, rem[j])                   # k-th largest value
        run_sum = run_sum + m
        run_sq = run_sq + m * m
        inv_k = 1.0 / float(k)
        mean = run_sum * inv_k
        ss = float(k) * (run_sq * inv_k - mean * mean)
        delta = (1.0 - ss) * inv_k
        tau = mean - jnp.sqrt(jnp.maximum(delta, 0.0))
        # support test (tau_k <= k-th value) is prefix-monotone: keep last true
        tau_star = jnp.where(tau <= m, tau, tau_star)
        if k < n:
            # remove exactly ONE occurrence of the current max (lowest slab idx)
            is_m = rem[0] == m
            new_rem = [jnp.where(is_m, neg_big, rem[0])]
            taken = is_m
            for j in range(1, n):
                is_m = (rem[j] == m) & jnp.logical_not(taken)
                new_rem.append(jnp.where(is_m, neg_big, rem[j]))
                if j + 1 < n:
                    taken = taken | is_m
            rem = new_rem

    return [jnp.maximum(zj - tau_star, 0.0) ** 2 for zj in z]


# ----------------------------------------------------------------------------
# Pallas kernel: one (E, Mb) lane block of flattened positions per grid step.
# ----------------------------------------------------------------------------
def _make_kernel(E, H, P, Mb):
    HE = H * E

    def kernel(x_ref, w_ref, b_ref, seg_ref, o_ref):
        # ---- ONE fused projection matmul: (3E, E) @ (E, Mb) + bias ----------
        qkv = jnp.dot(w_ref[...], x_ref[...],
                      preferred_element_type=jnp.float32) + b_ref[...]
        qT = qkv[0:E, :]                      # (E, Mb)
        kT = qkv[E:2 * E, :]
        vT = qkv[2 * E:3 * E, :]

        # ---- scores for all (query i, key j) pairs via ONE segment-sum matmul
        #   prod[j*E + i*P + p, m] = q[i*P+p, m] * k[j*P+p, m]
        #   scores[j*H + i, m]     = (1/sqrt(E)) * sum_p prod[j*E + i*P + p, m]
        q_rep = jnp.tile(qT, (H, 1))                                     # (H*E, Mb)
        k_rep = jnp.broadcast_to(kT.reshape(H, 1, P, Mb),
                                 (H, H, P, Mb)).reshape(HE, Mb)          # (H*E, Mb)
        scores = jnp.dot(seg_ref[...], q_rep * k_rep,
                         preferred_element_type=jnp.float32)             # (H*H, Mb)

        # ---- exact entmax-1.5 over key heads, batched across query heads ----
        slabs = [scores[j * H:(j + 1) * H, :] for j in range(H)]         # H x (H, Mb)
        attn = _entmax15_over_slabs(slabs)                               # H x (H, Mb)

        # ---- weighted values; eager lane-dense per-head stores ---------------
        # TODO(synk): for H >= 8 convert these static loops to
        # lax.fori_loop(..., unroll=True) to bound vreg live ranges.
        for i in range(H):
            out_i = attn[0][i:i + 1, :] * vT[0:P, :]
            for j in range(1, H):
                out_i = out_i + attn[j][i:i + 1, :] * vT[j * P:(j + 1) * P, :]
            o_ref[i * P:(i + 1) * P, :] = out_i

    return kernel


# ----------------------------------------------------------------------------
# generation-aware VMEM budget + lane-block picker
# ----------------------------------------------------------------------------
def _vmem_limit_bytes():
    """~75% of physical VMEM: ~48 MiB on v7x (64 MiB), ~96 MiB on v5e/v6e (128 MiB)."""
    cap = 64 * 1024 * 1024                    # conservative fallback (v7x-sized)
    try:
        info = pltpu.get_tpu_info()
        cap = int(getattr(info, "vmem_capacity_bytes", cap))
    except Exception:
        pass
    return (cap * 3) // 4


def _pick_block_m(m_raw, E, H, budget_bytes, min_steps=4):
    # rough f32 bytes per lane column: double-buffered in/out blocks, fused qkv
    # slab, the H^2-replicated score operands, and entmax temporaries (generous).
    per_col = 4 * (4 * E + 3 * E + 2 * E + 3 * H * E + 10 * H * H)
    mb = (budget_bytes // max(per_col, 1)) // 128 * 128
    # keep >= min_steps grid steps so megacore sharding (v7x: 2 TCs) and the
    # DMA/compute pipeline have work; lane width stays a multiple of 128.
    by_steps = ((pl.cdiv(m_raw, min_steps)) + 127) // 128 * 128
    mb = min(mb, by_steps)
    return max(128, mb)


# ----------------------------------------------------------------------------
# wrapper: layout plumbing (transpose / pad / weight stacking) done in XLA.
# ----------------------------------------------------------------------------
def multi_head_attention_pallas(x, params, *, heads, block_m=None,
                                use_bf16_matmul=False):
    C, T, E = x.shape
    H = heads
    assert E % H == 0
    P = E // H
    scale = 1.0 / math.sqrt(float(E))

    # Per-head Linear weights expanded to block-diagonal (E, E) left-multipliers
    # for the (E, M) layout, all three stacked into ONE (3E, E) operand.
    # TODO(synk): for E > 128 skip the kron expansion (the zero off-diagonal
    # blocks waste MXU flops / VMEM there).
    eye_h = jnp.eye(H, dtype=jnp.float32)
    w_all = jnp.concatenate([
        jnp.kron(eye_h, params["wq"].astype(jnp.float32)),
        jnp.kron(eye_h, params["wk"].astype(jnp.float32)),
        jnp.kron(eye_h, params["wv"].astype(jnp.float32)),
    ], axis=0)                                                  # (3E, E)
    b_all = jnp.concatenate([
        jnp.tile(params["bq"].astype(jnp.float32), H),
        jnp.tile(params["bk"].astype(jnp.float32), H),
        jnp.tile(params["bv"].astype(jnp.float32), H),
    ], axis=0)[:, None]                                         # (3E, 1)

    # segment-sum matrix with the 1/sqrt(E) scale folded in (key-head-major rows)
    r = jnp.arange(H * H, dtype=jnp.int32)[:, None]
    c = jnp.arange(H * E, dtype=jnp.int32)[None, :]
    seg = jnp.where(c // P == r, jnp.float32(scale), jnp.float32(0.0))   # (H*H, H*E)

    # layout plumbing in the wrapper: positions -> lanes, pad to the block size
    m_raw = C * T
    vmem_limit = _vmem_limit_bytes()
    if block_m is not None:
        Mb = max(128, ((block_m + 127) // 128) * 128)
    else:
        Mb = _pick_block_m(m_raw, E, H, vmem_limit)
    m_pad = pl.cdiv(m_raw, Mb) * Mb

    xT = x.astype(jnp.float32).reshape(m_raw, E).T               # (E, M)
    if m_pad != m_raw:
        xT = jnp.pad(xT, ((0, 0), (0, m_pad - m_raw)))

    mat_dtype = jnp.bfloat16 if use_bf16_matmul else jnp.float32
    xT = xT.astype(mat_dtype)
    w_all = w_all.astype(mat_dtype)

    kernel = _make_kernel(E, H, P, Mb)

    outT = pl.pallas_call(
        kernel,
        out_shape=jax.ShapeDtypeStruct((E, m_pad), jnp.float32),
        grid=(m_pad // Mb,),
        in_specs=[
            pl.BlockSpec((E, Mb), lambda m: (0, m)),            # x slab block
            pl.BlockSpec((3 * E, E), lambda m: (0, 0)),         # stacked W (resident)
            pl.BlockSpec((3 * E, 1), lambda m: (0, 0)),         # stacked bias
            pl.BlockSpec((H * H, H * E), lambda m: (0, 0)),     # segment-sum matrix
        ],
        out_specs=pl.BlockSpec((E, Mb), lambda m: (0, m)),
        compiler_params=pltpu.CompilerParams(
            dimension_semantics=("parallel",),                  # blocks independent
            vmem_limit_bytes=vmem_limit),
    )(xT, w_all, b_all, seg)

    return outT[:, :m_raw].T.reshape(C, T, E)


# ----------------------------------------------------------------------------
# pure-JAX reference (mirrors the PyTorch forward, incl. library entmax15)
# ----------------------------------------------------------------------------
def _entmax15_ref(x):
    x = x - jnp.max(x, axis=-1, keepdims=True)
    x = x / 2.0
    xs = jnp.flip(jnp.sort(x, axis=-1), axis=-1)
    n = x.shape[-1]
    rho = jnp.arange(1, n + 1, dtype=x.dtype)
    mean = jnp.cumsum(xs, axis=-1) / rho
    meansq = jnp.cumsum(xs * xs, axis=-1) / rho
    ss = rho * (meansq - mean * mean)
    delta = (1.0 - ss) / rho
    tau = mean - jnp.sqrt(jnp.clip(delta, 0.0))
    support = jnp.sum((tau <= xs).astype(jnp.int32), axis=-1, keepdims=True)
    tau_star = jnp.take_along_axis(tau, support - 1, axis=-1)
    return jnp.clip(x - tau_star, 0.0) ** 2


def multi_head_attention_ref(x, params, *, heads):
    C, T, E = x.shape
    P = E // heads
    xh = x.reshape(C, T, heads, P)
    q = jnp.einsum("cthp,qp->cthq", xh, params["wq"]) + params["bq"]
    k = jnp.einsum("cthp,qp->cthq", xh, params["wk"]) + params["bk"]
    v = jnp.einsum("cthp,qp->cthq", xh, params["wv"]) + params["bv"]
    s = jnp.einsum("ctip,ctjp->ctij", q, k) / math.sqrt(float(E))
    attn = _entmax15_ref(s)
    out = jnp.einsum("ctij,ctjp->ctip", attn, v)
    return out.reshape(C, T, E)


if __name__ == "__main__":
    C, T, E, H = 2, 16, 32, 4
    P = E // H

    key = jax.random.PRNGKey(0)
    ks = jax.random.split(key, 7)
    x = jax.random.normal(ks[0], (C, T, E), jnp.float32)
    params = {
        "wq": jax.random.normal(ks[1], (P, P), jnp.float32) * 0.3,
        "bq": jax.random.normal(ks[2], (P,), jnp.float32) * 0.1,
        "wk": jax.random.normal(ks[3], (P, P), jnp.float32) * 0.3,
        "bk": jax.random.normal(ks[4], (P,), jnp.float32) * 0.1,
        "wv": jax.random.normal(ks[5], (P, P), jnp.float32) * 0.3,
        "bv": jax.random.normal(ks[6], (P,), jnp.float32) * 0.1,
    }

    out = jax.block_until_ready(multi_head_attention_pallas(x, params, heads=H))
    ref = multi_head_attention_ref(x, params, heads=H)

    assert out.shape == (C, T, E)
    np.testing.assert_allclose(np.asarray(out), np.asarray(ref), rtol=1e-4, atol=1e-4)
    print("KERNEL_OK")
</pallas_src>

<mosaic_0001>
module attributes {stable_mosaic.version = 11 : i64} {
  func.func @kernel(%arg0: i32, %arg1: memref<32x128xf32, #tpu.memory_space<vmem>>, %arg2: memref<96x32xf32, #tpu.memory_space<vmem>>, %arg3: memref<96x1xf32, #tpu.memory_space<vmem>>, %arg4: memref<16x128xf32, #tpu.memory_space<vmem>>, %arg5: memref<32x128xf32, #tpu.memory_space<vmem>>) attributes {dimension_semantics = [#tpu.dimension_semantics<parallel>], iteration_bounds = array<i64: 1>, scalar_prefetch = 0 : i64, scratch_operands = 0 : i64, tpu.core_type = #tpu.core_type<tc>, window_params = [{transform_indices = @transform_0, window_bounds = array<i64: 32, 128>}, {pipeline_mode = #tpu.pipeline_mode<synchronous>, transform_indices = @transform_1, window_bounds = array<i64: 96, 32>}, {pipeline_mode = #tpu.pipeline_mode<synchronous>, transform_indices = @transform_2, window_bounds = array<i64: 96, 1>}, {pipeline_mode = #tpu.pipeline_mode<synchronous>, transform_indices = @transform_3, window_bounds = array<i64: 16, 128>}, {transform_indices = @transform_4, window_bounds = array<i64: 32, 128>}]} {
    %c0 = arith.constant 0 : index
    %c0_0 = arith.constant 0 : index
    %0 = vector.load %arg2[%c0, %c0_0] : memref<96x32xf32, #tpu.memory_space<vmem>>, vector<96x32xf32>
    %c0_1 = arith.constant 0 : index
    %c0_2 = arith.constant 0 : index
    %1 = vector.load %arg1[%c0_1, %c0_2] : memref<32x128xf32, #tpu.memory_space<vmem>>, vector<32x128xf32>
    %cst = arith.constant dense<0.000000e+00> : vector<96x128xf32>
    %2 = tpu.matmul %0, %1, %cst {dimension_numbers = #tpu.dot_dimension_numbers<[1], [0], [0], [1], [0, 0, 1, 1], [], []>} : vector<96x32xf32>, vector<32x128xf32>, vector<96x128xf32> -> vector<96x128xf32>
    %c0_3 = arith.constant 0 : index
    %c0_4 = arith.constant 0 : index
    %3 = vector.load %arg3[%c0_3, %c0_4] : memref<96x1xf32, #tpu.memory_space<vmem>>, vector<96x1xf32>
    %4 = vector.broadcast %3 : vector<96x1xf32> to vector<96x128xf32>
    %5 = arith.addf %2, %4 : vector<96x128xf32>
    %6 = vector.extract_strided_slice %5 {offsets = [0, 0], sizes = [32, 128], strides = [1, 1]} : vector<96x128xf32> to vector<32x128xf32>
    %7 = vector.extract_strided_slice %5 {offsets = [32, 0], sizes = [32, 128], strides = [1, 1]} : vector<96x128xf32> to vector<32x128xf32>
    %8 = vector.extract_strided_slice %5 {offsets = [64, 0], sizes = [32, 128], strides = [1, 1]} : vector<96x128xf32> to vector<32x128xf32>
    %9 = tpu.concatenate %6, %6, %6, %6 in 0 : vector<32x128xf32>, vector<32x128xf32>, vector<32x128xf32>, vector<32x128xf32> -> vector<128x128xf32>
    %10 = vector.shape_cast %7 : vector<32x128xf32> to vector<4x1x8x128xf32>
    %11 = vector.shape_cast %10 : vector<4x1x8x128xf32> to vector<4x1x8x128xf32>
    %12 = vector.broadcast %11 : vector<4x1x8x128xf32> to vector<4x4x8x128xf32>
    %13 = vector.shape_cast %12 : vector<4x4x8x128xf32> to vector<128x128xf32>
    %c0_5 = arith.constant 0 : index
    %c0_6 = arith.constant 0 : index
    %14 = vector.load %arg4[%c0_5, %c0_6] : memref<16x128xf32, #tpu.memory_space<vmem>>, vector<16x128xf32>
    %15 = arith.mulf %9, %13 : vector<128x128xf32>
    %cst_7 = arith.constant dense<0.000000e+00> : vector<16x128xf32>
    %16 = tpu.matmul %14, %15, %cst_7 {dimension_numbers = #tpu.dot_dimension_numbers<[1], [0], [0], [1], [0, 0, 1, 1], [], []>} : vector<16x128xf32>, vector<128x128xf32>, vector<16x128xf32> -> vector<16x128xf32>
    %17 = vector.extract_strided_slice %16 {offsets = [0, 0], sizes = [4, 128], strides = [1, 1]} : vector<16x128xf32> to vector<4x128xf32>
    %18 = vector.extract_strided_slice %16 {offsets = [4, 0], sizes = [4, 128], strides = [1, 1]} : vector<16x128xf32> to vector<4x128xf32>
    %19 = vector.extract_strided_slice %16 {offsets = [8, 0], sizes = [4, 128], strides = [1, 1]} : vector<16x128xf32> to vector<4x128xf32>
    %20 = vector.extract_strided_slice %16 {offsets = [12, 0], sizes = [4, 128], strides = [1, 1]} : vector<16x128xf32> to vector<4x128xf32>
    %21 = arith.maximumf %17, %18 : vector<4x128xf32>
    %22 = arith.maximumf %21, %19 : vector<4x128xf32>
    %23 = arith.maximumf %22, %20 : vector<4x128xf32>
    %24 = arith.subf %17, %23 : vector<4x128xf32>
    %cst_8 = arith.constant 5.000000e-01 : f32
    %25 = vector.broadcast %cst_8 : f32 to vector<4x128xf32>
    %26 = arith.mulf %24, %25 : vector<4x128xf32>
    %27 = arith.subf %18, %23 : vector<4x128xf32>
    %cst_9 = arith.constant 5.000000e-01 : f32
    %28 = vector.broadcast %cst_9 : f32 to vector<4x128xf32>
    %29 = arith.mulf %27, %28 : vector<4x128xf32>
    %30 = arith.subf %19, %23 : vector<4x128xf32>
    %cst_10 = arith.constant 5.000000e-01 : f32
    %31 = vector.broadcast %cst_10 : f32 to vector<4x128xf32>
    %32 = arith.mulf %30, %31 : vector<4x128xf32>
    %33 = arith.subf %20, %23 : vector<4x128xf32>
    %cst_11 = arith.constant 5.000000e-01 : f32
    %34 = vector.broadcast %cst_11 : f32 to vector<4x128xf32>
    %35 = arith.mulf %33, %34 : vector<4x128xf32>
    %cst_12 = arith.constant 0.000000e+00 : f32
    %36 = vector.broadcast %cst_12 : f32 to vector<4x128xf32>
    %cst_13 = arith.constant 0.000000e+00 : f32
    %37 = vector.broadcast %cst_13 : f32 to vector<4x128xf32>
    %cst_14 = arith.constant 0.000000e+00 : f32
    %38 = vector.broadcast %cst_14 : f32 to vector<4x128xf32>
    %39 = arith.maximumf %26, %29 : vector<4x128xf32>
    %40 = arith.maximumf %39, %32 : vector<4x128xf32>
    %41 = arith.maximumf %40, %35 : vector<4x128xf32>
    %42 = arith.addf %36, %41 : vector<4x128xf32>
    %43 = arith.mulf %41, %41 : vector<4x128xf32>
    %44 = arith.addf %37, %43 : vector<4x128xf32>
    %cst_15 = arith.constant 1.000000e+00 : f32
    %45 = vector.broadcast %cst_15 : f32 to vector<4x128xf32>
    %46 = arith.mulf %42, %45 : vector<4x128xf32>
    %cst_16 = arith.constant 1.000000e+00 : f32
    %47 = vector.broadcast %cst_16 : f32 to vector<4x128xf32>
    %48 = arith.mulf %44, %47 : vector<4x128xf32>
    %49 = arith.mulf %46, %46 : vector<4x128xf32>
    %50 = arith.subf %48, %49 : vector<4x128xf32>
    %cst_17 = arith.constant 1.000000e+00 : f32
    %51 = vector.broadcast %cst_17 : f32 to vector<4x128xf32>
    %52 = arith.mulf %51, %50 : vector<4x128xf32>
    %cst_18 = arith.constant 1.000000e+00 : f32
    %53 = vector.broadcast %cst_18 : f32 to vector<4x128xf32>
    %54 = arith.subf %53, %52 : vector<4x128xf32>
    %cst_19 = arith.constant 1.000000e+00 : f32
    %55 = vector.broadcast %cst_19 : f32 to vector<4x128xf32>
    %56 = arith.mulf %54, %55 : vector<4x128xf32>
    %cst_20 = arith.constant 0.000000e+00 : f32
    %57 = vector.broadcast %cst_20 : f32 to vector<4x128xf32>
    %58 = arith.maximumf %56, %57 : vector<4x128xf32>
    %59 = math.sqrt %58 : vector<4x128xf32>
    %60 = arith.subf %46, %59 : vector<4x128xf32>
    %61 = arith.cmpf ole, %60, %41 : vector<4x128xf32>
    %62 = arith.select %61, %60, %38 : vector<4x128xi1>, vector<4x128xf32>
    %63 = arith.cmpf oeq, %26, %41 : vector<4x128xf32>
    %cst_21 = arith.constant -1.000000e+30 : f32
    %64 = vector.broadcast %cst_21 : f32 to vector<4x128xf32>
    %65 = arith.select %63, %64, %26 : vector<4x128xi1>, vector<4x128xf32>
    %66 = arith.cmpf oeq, %29, %41 : vector<4x128xf32>
    %cst_22 = arith.constant dense<true> : vector<4x128xi1>
    %67 = arith.xori %63, %cst_22 : vector<4x128xi1>
    %68 = arith.andi %66, %67 : vector<4x128xi1>
    %cst_23 = arith.constant -1.000000e+30 : f32
    %69 = vector.broadcast %cst_23 : f32 to vector<4x128xf32>
    %70 = arith.select %68, %69, %29 : vector<4x128xi1>, vector<4x128xf32>
    %71 = arith.ori %63, %68 : vector<4x128xi1>
    %72 = arith.cmpf oeq, %32, %41 : vector<4x128xf32>
    %cst_24 = arith.constant dense<true> : vector<4x128xi1>
    %73 = arith.xori %71, %cst_24 : vector<4x128xi1>
    %74 = arith.andi %72, %73 : vector<4x128xi1>
    %cst_25 = arith.constant -1.000000e+30 : f32
    %75 = vector.broadcast %cst_25 : f32 to vector<4x128xf32>
    %76 = arith.select %74, %75, %32 : vector<4x128xi1>, vector<4x128xf32>
    %77 = arith.ori %71, %74 : vector<4x128xi1>
    %78 = arith.cmpf oeq, %35, %41 : vector<4x128xf32>
    %cst_26 = arith.constant dense<true> : vector<4x128xi1>
    %79 = arith.xori %77, %cst_26 : vector<4x128xi1>
    %80 = arith.andi %78, %79 : vector<4x128xi1>
    %cst_27 = arith.constant -1.000000e+30 : f32
    %81 = vector.broadcast %cst_27 : f32 to vector<4x128xf32>
    %82 = arith.select %80, %81, %35 : vector<4x128xi1>, vector<4x128xf32>
    %83 = arith.maximumf %65, %70 : vector<4x128xf32>
    %84 = arith.maximumf %83, %76 : vector<4x128xf32>
    %85 = arith.maximumf %84, %82 : vector<4x128xf32>
    %86 = arith.addf %42, %85 : vector<4x128xf32>
    %87 = arith.mulf %85, %85 : vector<4x128xf32>
    %88 = arith.addf %44, %87 : vector<4x128xf32>
    %cst_28 = arith.constant 5.000000e-01 : f32
    %89 = vector.broadcast %cst_28 : f32 to vector<4x128xf32>
    %90 = arith.mulf %86, %89 : vector<4x128xf32>
    %cst_29 = arith.constant 5.000000e-01 : f32
    %91 = vector.broadcast %cst_29 : f32 to vector<4x128xf32>
    %92 = arith.mulf %88, %91 : vector<4x128xf32>
    %93 = arith.mulf %90, %90 : vector<4x128xf32>
    %94 = arith.subf %92, %93 : vector<4x128xf32>
    %cst_30 = arith.constant 2.000000e+00 : f32
    %95 = vector.broadcast %cst_30 : f32 to vector<4x128xf32>
    %96 = arith.mulf %95, %94 : vector<4x128xf32>
    %cst_31 = arith.constant 1.000000e+00 : f32
    %97 = vector.broadcast %cst_31 : f32 to vector<4x128xf32>
    %98 = arith.subf %97, %96 : vector<4x128xf32>
    %cst_32 = arith.constant 5.000000e-01 : f32
    %99 = vector.broadcast %cst_32 : f32 to vector<4x128xf32>
    %100 = arith.mulf %98, %99 : vector<4x128xf32>
    %cst_33 = arith.constant 0.000000e+00 : f32
    %101 = vector.broadcast %cst_33 : f32 to vector<4x128xf32>
    %102 = arith.maximumf %100, %101 : vector<4x128xf32>
    %103 = math.sqrt %102 : vector<4x128xf32>
    %104 = arith.subf %90, %103 : vector<4x128xf32>
    %105 = arith.cmpf ole, %104, %85 : vector<4x128xf32>
    %106 = arith.select %105, %104, %62 : vector<4x128xi1>, vector<4x128xf32>
    %107 = arith.cmpf oeq, %65, %85 : vector<4x128xf32>
    %cst_34 = arith.constant -1.000000e+30 : f32
    %108 = vector.broadcast %cst_34 : f32 to vector<4x128xf32>
    %109 = arith.select %107, %108, %65 : vector<4x128xi1>, vector<4x128xf32>
    %110 = arith.cmpf oeq, %70, %85 : vector<4x128xf32>
    %cst_35 = arith.constant dense<true> : vector<4x128xi1>
    %111 = arith.xori %107, %cst_35 : vector<4x128xi1>
    %112 = arith.andi %110, %111 : vector<4x128xi1>
    %cst_36 = arith.constant -1.000000e+30 : f32
    %113 = vector.broadcast %cst_36 : f32 to vector<4x128xf32>
    %114 = arith.select %112, %113, %70 : vector<4x128xi1>, vector<4x128xf32>
    %115 = arith.ori %107, %112 : vector<4x128xi1>
    %116 = arith.cmpf oeq, %76, %85 : vector<4x128xf32>
    %cst_37 = arith.constant dense<true> : vector<4x128xi1>
    %117 = arith.xori %115, %cst_37 : vector<4x128xi1>
    %118 = arith.andi %116, %117 : vector<4x128xi1>
    %cst_38 = arith.constant -1.000000e+30 : f32
    %119 = vector.broadcast %cst_38 : f32 to vector<4x128xf32>
    %120 = arith.select %118, %119, %76 : vector<4x128xi1>, vector<4x128xf32>
    %121 = arith.ori %115, %118 : vector<4x128xi1>
    %122 = arith.cmpf oeq, %82, %85 : vector<4x128xf32>
    %cst_39 = arith.constant dense<true> : vector<4x128xi1>
    %123 = arith.xori %121, %cst_39 : vector<4x128xi1>
    %124 = arith.andi %122, %123 : vector<4x128xi1>
    %cst_40 = arith.constant -1.000000e+30 : f32
    %125 = vector.broadcast %cst_40 : f32 to vector<4x128xf32>
    %126 = arith.select %124, %125, %82 : vector<4x128xi1>, vector<4x128xf32>
    %127 = arith.maximumf %109, %114 : vector<4x128xf32>
    %128 = arith.maximumf %127, %120 : vector<4x128xf32>
    %129 = arith.maximumf %128, %126 : vector<4x128xf32>
    %130 = arith.addf %86, %129 : vector<4x128xf32>
    %131 = arith.mulf %129, %129 : vector<4x128xf32>
    %132 = arith.addf %88, %131 : vector<4x128xf32>
    %cst_41 = arith.constant 0.333333343 : f32
    %133 = vector.broadcast %cst_41 : f32 to vector<4x128xf32>
    %134 = arith.mulf %130, %133 : vector<4x128xf32>
    %cst_42 = arith.constant 0.333333343 : f32
    %135 = vector.broadcast %cst_42 : f32 to vector<4x128xf32>
    %136 = arith.mulf %132, %135 : vector<4x128xf32>
    %137 = arith.mulf %134, %134 : vector<4x128xf32>
    %138 = arith.subf %136, %137 : vector<4x128xf32>
    %cst_43 = arith.constant 3.000000e+00 : f32
    %139 = vector.broadcast %cst_43 : f32 to vector<4x128xf32>
    %140 = arith.mulf %139, %138 : vector<4x128xf32>
    %cst_44 = arith.constant 1.000000e+00 : f32
    %141 = vector.broadcast %cst_44 : f32 to vector<4x128xf32>
    %142 = arith.subf %141, %140 : vector<4x128xf32>
    %cst_45 = arith.constant 0.333333343 : f32
    %143 = vector.broadcast %cst_45 : f32 to vector<4x128xf32>
    %144 = arith.mulf %142, %143 : vector<4x128xf32>
    %cst_46 = arith.constant 0.000000e+00 : f32
    %145 = vector.broadcast %cst_46 : f32 to vector<4x128xf32>
    %146 = arith.maximumf %144, %145 : vector<4x128xf32>
    %147 = math.sqrt %146 : vector<4x128xf32>
    %148 = arith.subf %134, %147 : vector<4x128xf32>
    %149 = arith.cmpf ole, %148, %129 : vector<4x128xf32>
    %150 = arith.select %149, %148, %106 : vector<4x128xi1>, vector<4x128xf32>
    %151 = arith.cmpf oeq, %109, %129 : vector<4x128xf32>
    %cst_47 = arith.constant -1.000000e+30 : f32
    %152 = vector.broadcast %cst_47 : f32 to vector<4x128xf32>
    %153 = arith.select %151, %152, %109 : vector<4x128xi1>, vector<4x128xf32>
    %154 = arith.cmpf oeq, %114, %129 : vector<4x128xf32>
    %cst_48 = arith.constant dense<true> : vector<4x128xi1>
    %155 = arith.xori %151, %cst_48 : vector<4x128xi1>
    %156 = arith.andi %154, %155 : vector<4x128xi1>
    %cst_49 = arith.constant -1.000000e+30 : f32
    %157 = vector.broadcast %cst_49 : f32 to vector<4x128xf32>
    %158 = arith.select %156, %157, %114 : vector<4x128xi1>, vector<4x128xf32>
    %159 = arith.ori %151, %156 : vector<4x128xi1>
    %160 = arith.cmpf oeq, %120, %129 : vector<4x128xf32>
    %cst_50 = arith.constant dense<true> : vector<4x128xi1>
    %161 = arith.xori %159, %cst_50 : vector<4x128xi1>
    %162 = arith.andi %160, %161 : vector<4x128xi1>
    %cst_51 = arith.constant -1.000000e+30 : f32
    %163 = vector.broadcast %cst_51 : f32 to vector<4x128xf32>
    %164 = arith.select %162, %163, %120 : vector<4x128xi1>, vector<4x128xf32>
    %165 = arith.ori %159, %162 : vector<4x128xi1>
    %166 = arith.cmpf oeq, %126, %129 : vector<4x128xf32>
    %cst_52 = arith.constant dense<true> : vector<4x128xi1>
    %167 = arith.xori %165, %cst_52 : vector<4x128xi1>
    %168 = arith.andi %166, %167 : vector<4x128xi1>
    %cst_53 = arith.constant -1.000000e+30 : f32
    %169 = vector.broadcast %cst_53 : f32 to vector<4x128xf32>
    %170 = arith.select %168, %169, %126 : vector<4x128xi1>, vector<4x128xf32>
    %171 = arith.maximumf %153, %158 : vector<4x128xf32>
    %172 = arith.maximumf %171, %164 : vector<4x128xf32>
    %173 = arith.maximumf %172, %170 : vector<4x128xf32>
    %174 = arith.addf %130, %173 : vector<4x128xf32>
    %175 = arith.mulf %173, %173 : vector<4x128xf32>
    %176 = arith.addf %132, %175 : vector<4x128xf32>
    %cst_54 = arith.constant 2.500000e-01 : f32
    %177 = vector.broadcast %cst_54 : f32 to vector<4x128xf32>
    %178 = arith.mulf %174, %177 : vector<4x128xf32>
    %cst_55 = arith.constant 2.500000e-01 : f32
    %179 = vector.broadcast %cst_55 : f32 to vector<4x128xf32>
    %180 = arith.mulf %176, %179 : vector<4x128xf32>
    %181 = arith.mulf %178, %178 : vector<4x128xf32>
    %182 = arith.subf %180, %181 : vector<4x128xf32>
    %cst_56 = arith.constant 4.000000e+00 : f32
    %183 = vector.broadcast %cst_56 : f32 to vector<4x128xf32>
    %184 = arith.mulf %183, %182 : vector<4x128xf32>
    %cst_57 = arith.constant 1.000000e+00 : f32
    %185 = vector.broadcast %cst_57 : f32 to vector<4x128xf32>
    %186 = arith.subf %185, %184 : vector<4x128xf32>
    %cst_58 = arith.constant 2.500000e-01 : f32
    %187 = vector.broadcast %cst_58 : f32 to vector<4x128xf32>
    %188 = arith.mulf %186, %187 : vector<4x128xf32>
    %cst_59 = arith.constant 0.000000e+00 : f32
    %189 = vector.broadcast %cst_59 : f32 to vector<4x128xf32>
    %190 = arith.maximumf %188, %189 : vector<4x128xf32>
    %191 = math.sqrt %190 : vector<4x128xf32>
    %192 = arith.subf %178, %191 : vector<4x128xf32>
    %193 = arith.cmpf ole, %192, %173 : vector<4x128xf32>
    %194 = arith.select %193, %192, %150 : vector<4x128xi1>, vector<4x128xf32>
    %195 = arith.subf %26, %194 : vector<4x128xf32>
    %cst_60 = arith.constant 0.000000e+00 : f32
    %196 = vector.broadcast %cst_60 : f32 to vector<4x128xf32>
    %197 = arith.maximumf %195, %196 : vector<4x128xf32>
    %198 = arith.mulf %197, %197 : vector<4x128xf32>
    %199 = arith.subf %29, %194 : vector<4x128xf32>
    %cst_61 = arith.constant 0.000000e+00 : f32
    %200 = vector.broadcast %cst_61 : f32 to vector<4x128xf32>
    %201 = arith.maximumf %199, %200 : vector<4x128xf32>
    %202 = arith.mulf %201, %201 : vector<4x128xf32>
    %203 = arith.subf %32, %194 : vector<4x128xf32>
    %cst_62 = arith.constant 0.000000e+00 : f32
    %204 = vector.broadcast %cst_62 : f32 to vector<4x128xf32>
    %205 = arith.maximumf %203, %204 : vector<4x128xf32>
    %206 = arith.mulf %205, %205 : vector<4x128xf32>
    %207 = arith.subf %35, %194 : vector<4x128xf32>
    %cst_63 = arith.constant 0.000000e+00 : f32
    %208 = vector.broadcast %cst_63 : f32 to vector<4x128xf32>
    %209 = arith.maximumf %207, %208 : vector<4x128xf32>
    %210 = arith.mulf %209, %209 : vector<4x128xf32>
    %211 = vector.extract_strided_slice %198 {offsets = [0, 0], sizes = [1, 128], strides = [1, 1]} : vector<4x128xf32> to vector<1x128xf32>
    %212 = vector.extract_strided_slice %8 {offsets = [0, 0], sizes = [8, 128], strides = [1, 1]} : vector<32x128xf32> to vector<8x128xf32>
    %213 = vector.broadcast %211 : vector<1x128xf32> to vector<8x128xf32>
    %214 = arith.mulf %213, %212 : vector<8x128xf32>
    %215 = vector.extract_strided_slice %202 {offsets = [0, 0], sizes = [1, 128], strides = [1, 1]} : vector<4x128xf32> to vector<1x128xf32>
    %216 = vector.extract_strided_slice %8 {offsets = [8, 0], sizes = [8, 128], strides = [1, 1]} : vector<32x128xf32> to vector<8x128xf32>
    %217 = vector.broadcast %215 : vector<1x128xf32> to vector<8x128xf32>
    %218 = arith.mulf %217, %216 : vector<8x128xf32>
    %219 = arith.addf %214, %218 : vector<8x128xf32>
    %220 = vector.extract_strided_slice %206 {offsets = [0, 0], sizes = [1, 128], strides = [1, 1]} : vector<4x128xf32> to vector<1x128xf32>
    %221 = vector.extract_strided_slice %8 {offsets = [16, 0], sizes = [8, 128], strides = [1, 1]} : vector<32x128xf32> to vector<8x128xf32>
    %222 = vector.broadcast %220 : vector<1x128xf32> to vector<8x128xf32>
    %223 = arith.mulf %222, %221 : vector<8x128xf32>
    %224 = arith.addf %219, %223 : vector<8x128xf32>
    %225 = vector.extract_strided_slice %210 {offsets = [0, 0], sizes = [1, 128], strides = [1, 1]} : vector<4x128xf32> to vector<1x128xf32>
    %226 = vector.extract_strided_slice %8 {offsets = [24, 0], sizes = [8, 128], strides = [1, 1]} : vector<32x128xf32> to vector<8x128xf32>
    %227 = vector.broadcast %225 : vector<1x128xf32> to vector<8x128xf32>
    %228 = arith.mulf %227, %226 : vector<8x128xf32>
    %229 = arith.addf %224, %228 : vector<8x128xf32>
    %c0_64 = arith.constant 0 : index
    %c0_65 = arith.constant 0 : index
    %230 = vector.load %arg5[%c0_64, %c0_65] : memref<32x128xf32, #tpu.memory_space<vmem>>, vector<8x128xf32>
    tpu.vector_store %arg5[%c0_64, %c0_65], %229 {strides = array<i32>} : memref<32x128xf32, #tpu.memory_space<vmem>>, vector<8x128xf32>,
    %231 = vector.extract_strided_slice %198 {offsets = [1, 0], sizes = [1, 128], strides = [1, 1]} : vector<4x128xf32> to vector<1x128xf32>
    %232 = vector.extract_strided_slice %8 {offsets = [0, 0], sizes = [8, 128], strides = [1, 1]} : vector<32x128xf32> to vector<8x128xf32>
    %233 = vector.broadcast %231 : vector<1x128xf32> to vector<8x128xf32>
    %234 = arith.mulf %233, %232 : vector<8x128xf32>
    %235 = vector.extract_strided_slice %202 {offsets = [1, 0], sizes = [1, 128], strides = [1, 1]} : vector<4x128xf32> to vector<1x128xf32>
    %236 = vector.extract_strided_slice %8 {offsets = [8, 0], sizes = [8, 128], strides = [1, 1]} : vector<32x128xf32> to vector<8x128xf32>
    %237 = vector.broadcast %235 : vector<1x128xf32> to vector<8x128xf32>
    %238 = arith.mulf %237, %236 : vector<8x128xf32>
    %239 = arith.addf %234, %238 : vector<8x128xf32>
    %240 = vector.extract_strided_slice %206 {offsets = [1, 0], sizes = [1, 128], strides = [1, 1]} : vector<4x128xf32> to vector<1x128xf32>
    %241 = vector.extract_strided_slice %8 {offsets = [16, 0], sizes = [8, 128], strides = [1, 1]} : vector<32x128xf32> to vector<8x128xf32>
    %242 = vector.broadcast %240 : vector<1x128xf32> to vector<8x128xf32>
    %243 = arith.mulf %242, %241 : vector<8x128xf32>
    %244 = arith.addf %239, %243 : vector<8x128xf32>
    %245 = vector.extract_strided_slice %210 {offsets = [1, 0], sizes = [1, 128], strides = [1, 1]} : vector<4x128xf32> to vector<1x128xf32>
    %246 = vector.extract_strided_slice %8 {offsets = [24, 0], sizes = [8, 128], strides = [1, 1]} : vector<32x128xf32> to vector<8x128xf32>
    %247 = vector.broadcast %245 : vector<1x128xf32> to vector<8x128xf32>
    %248 = arith.mulf %247, %246 : vector<8x128xf32>
    %249 = arith.addf %244, %248 : vector<8x128xf32>
    %c8 = arith.constant 8 : index
    %c0_66 = arith.constant 0 : index
    %250 = vector.load %arg5[%c8, %c0_66] : memref<32x128xf32, #tpu.memory_space<vmem>>, vector<8x128xf32>
    tpu.vector_store %arg5[%c8, %c0_66], %249 {strides = array<i32>} : memref<32x128xf32, #tpu.memory_space<vmem>>, vector<8x128xf32>,
    %251 = vector.extract_strided_slice %198 {offsets = [2, 0], sizes = [1, 128], strides = [1, 1]} : vector<4x128xf32> to vector<1x128xf32>
    %252 = vector.extract_strided_slice %8 {offsets = [0, 0], sizes = [8, 128], strides = [1, 1]} : vector<32x128xf32> to vector<8x128xf32>
    %253 = vector.broadcast %251 : vector<1x128xf32> to vector<8x128xf32>
    %254 = arith.mulf %253, %252 : vector<8x128xf32>
    %255 = vector.extract_strided_slice %202 {offsets = [2, 0], sizes = [1, 128], strides = [1, 1]} : vector<4x128xf32> to vector<1x128xf32>
    %256 = vector.extract_strided_slice %8 {offsets = [8, 0], sizes = [8, 128], strides = [1, 1]} : vector<32x128xf32> to vector<8x128xf32>
    %257 = vector.broadcast %255 : vector<1x128xf32> to vector<8x128xf32>
    %258 = arith.mulf %257, %256 : vector<8x128xf32>
    %259 = arith.addf %254, %258 : vector<8x128xf32>
    %260 = vector.extract_strided_slice %206 {offsets = [2, 0], sizes = [1, 128], strides = [1, 1]} : vector<4x128xf32> to vector<1x128xf32>
    %261 = vector.extract_strided_slice %8 {offsets = [16, 0], sizes = [8, 128], strides = [1, 1]} : vector<32x128xf32> to vector<8x128xf32>
    %262 = vector.broadcast %260 : vector<1x128xf32> to vector<8x128xf32>
    %263 = arith.mulf %262, %261 : vector<8x128xf32>
    %264 = arith.addf %259, %263 : vector<8x128xf32>
    %265 = vector.extract_strided_slice %210 {offsets = [2, 0], sizes = [1, 128], strides = [1, 1]} : vector<4x128xf32> to vector<1x128xf32>
    %266 = vector.extract_strided_slice %8 {offsets = [24, 0], sizes = [8, 128], strides = [1, 1]} : vector<32x128xf32> to vector<8x128xf32>
    %267 = vector.broadcast %265 : vector<1x128xf32> to vector<8x128xf32>
    %268 = arith.mulf %267, %266 : vector<8x128xf32>
    %269 = arith.addf %264, %268 : vector<8x128xf32>
    %c16 = arith.constant 16 : index
    %c0_67 = arith.constant 0 : index
    %270 = vector.load %arg5[%c16, %c0_67] : memref<32x128xf32, #tpu.memory_space<vmem>>, vector<8x128xf32>
    tpu.vector_store %arg5[%c16, %c0_67], %269 {strides = array<i32>} : memref<32x128xf32, #tpu.memory_space<vmem>>, vector<8x128xf32>,
    %271 = vector.extract_strided_slice %198 {offsets = [3, 0], sizes = [1, 128], strides = [1, 1]} : vector<4x128xf32> to vector<1x128xf32>
    %272 = vector.extract_strided_slice %8 {offsets = [0, 0], sizes = [8, 128], strides = [1, 1]} : vector<32x128xf32> to vector<8x128xf32>
    %273 = vector.broadcast %271 : vector<1x128xf32> to vector<8x128xf32>
    %274 = arith.mulf %273, %272 : vector<8x128xf32>
    %275 = vector.extract_strided_slice %202 {offsets = [3, 0], sizes = [1, 128], strides = [1, 1]} : vector<4x128xf32> to vector<1x128xf32>
    %276 = vector.extract_strided_slice %8 {offsets = [8, 0], sizes = [8, 128], strides = [1, 1]} : vector<32x128xf32> to vector<8x128xf32>
    %277 = vector.broadcast %275 : vector<1x128xf32> to vector<8x128xf32>
    %278 = arith.mulf %277, %276 : vector<8x128xf32>
    %279 = arith.addf %274, %278 : vector<8x128xf32>
    %280 = vector.extract_strided_slice %206 {offsets = [3, 0], sizes = [1, 128], strides = [1, 1]} : vector<4x128xf32> to vector<1x128xf32>
    %281 = vector.extract_strided_slice %8 {offsets = [16, 0], sizes = [8, 128], strides = [1, 1]} : vector<32x128xf32> to vector<8x128xf32>
    %282 = vector.broadcast %280 : vector<1x128xf32> to vector<8x128xf32>
    %283 = arith.mulf %282, %281 : vector<8x128xf32>
    %284 = arith.addf %279, %283 : vector<8x128xf32>
    %285 = vector.extract_strided_slice %210 {offsets = [3, 0], sizes = [1, 128], strides = [1, 1]} : vector<4x128xf32> to vector<1x128xf32>
    %286 = vector.extract_strided_slice %8 {offsets = [24, 0], sizes = [8, 128], strides = [1, 1]} : vector<32x128xf32> to vector<8x128xf32>
    %287 = vector.broadcast %285 : vector<1x128xf32> to vector<8x128xf32>
    %288 = arith.mulf %287, %286 : vector<8x128xf32>
    %289 = arith.addf %284, %288 : vector<8x128xf32>
    %c24 = arith.constant 24 : index
    %c0_68 = arith.constant 0 : index
    %290 = vector.load %arg5[%c24, %c0_68] : memref<32x128xf32, #tpu.memory_space<vmem>>, vector<8x128xf32>
    tpu.vector_store %arg5[%c24, %c0_68], %289 {strides = array<i32>} : memref<32x128xf32, #tpu.memory_space<vmem>>, vector<8x128xf32>,
    return
  }
  func.func @transform_0(%arg0: i32) -> (i32, i32) {
    %c0_i32 = arith.constant 0 : i32
    %c0_i32_0 = arith.constant 0 : i32
    return %c0_i32, %arg0 : i32, i32
  }
  func.func @transform_1(%arg0: i32) -> (i32, i32) {
    %c0_i32 = arith.constant 0 : i32
    %c0_i32_0 = arith.constant 0 : i32
    %c0_i32_1 = arith.constant 0 : i32
    return %c0_i32, %c0_i32_0 : i32, i32
  }
  func.func @transform_2(%arg0: i32) -> (i32, i32) {
    %c0_i32 = arith.constant 0 : i32
    %c0_i32_0 = arith.constant 0 : i32
    %c0_i32_1 = arith.constant 0 : i32
    return %c0_i32, %c0_i32_0 : i32, i32
  }
  func.func @transform_3(%arg0: i32) -> (i32, i32) {
    %c0_i32 = arith.constant 0 : i32
    %c0_i32_0 = arith.constant 0 : i32
    %c0_i32_1 = arith.constant 0 : i32
    return %c0_i32, %c0_i32_0 : i32, i32
  }
  func.func @transform_4(%arg0: i32) -> (i32, i32) {
    %c0_i32 = arith.constant 0 : i32
    %c0_i32_0 = arith.constant 0 : i32
    return %c0_i32, %arg0 : i32, i32
  }
}

</mosaic_0001>

<llo_original>
// kernel: tpu_custom_call.1
$region0: #{tpu_custom_call.1}
  #allocation0 [shape = 'u32[]', space=smem, size = 0x4, offset = 0x4, fixed_abs, tag = 'smem constant byte address 0x4 - core index']
  #allocation1 [shape = 'u32[72,128]{1,0:T(1,128)}', space=vmem, size = 0x9000, scoped, tag = 'internal scratch']
  %s0 = inlined_call_operand.vmem [shape: f32[32,128], index: 0, kind: input, shape index: {}]
  %s1 = inlined_call_operand.vmem [shape: f32[96,32], index: 1, kind: input, shape index: {}]
  %s2 = inlined_call_operand.vmem [shape: f32[96,1], index: 2, kind: input, shape index: {}]
  %s3 = inlined_call_operand.vmem [shape: f32[16,128], index: 3, kind: input, shape index: {}]
  %s4 = inlined_call_operand.hbm [shape: f32[32,128], index: 4, kind: output, shape index: {}]
  %s5 = sld [smem:[#allocation0]]
  $region26: #{tpu_custom_call.1} parent=0
    _
  %s7 = ssub.s32 1, %s5
  %s8 = scalar_select 0, %s7, %s5
  $region1: #{tpu_custom_call.1} parent=0
    #allocation2 [shape = 'u8[16384]{0}', space=vmem, size = 0x4000, scoped, tag = 'output window, operand 0, single buffered']
    #allocation3 [shape = 's32[1]{0}', space=sflag, size = 0x4, scoped, tag = 'scoped memory for tpu_custom_call.1']
    %9 = vsyncpa [#allocation3], 0
    // Predicated region
    $region2: #{tpu_custom_call.1} parent=1 // pred_check
      _
    $region3: #{tpu_custom_call.1} parent=1 // pred_check_branch
      %11 = sbr.rel (0) target = $region5
    $region4: #{tpu_custom_call.1} parent=1 // pred_region
      _
    $region5: #{tpu_custom_call.1} parent=1 // pred_fallthru
      _
    // Predicated region
    $region6: #{tpu_custom_call.1} parent=1 // pred_check
      _
    $region7: #{tpu_custom_call.1} parent=1 // pred_check_branch
      %13 = sbr.rel (0) target = $region9
    $region8: #{tpu_custom_call.1} parent=1 // pred_region
      _
    $region9: #{tpu_custom_call.1} parent=1 // pred_fallthru
      _
    // Predicated region
    $region10: #{tpu_custom_call.1} parent=1 // pred_check
      _
    $region11: #{tpu_custom_call.1} parent=1 // pred_check_branch
      %15 = sbr.rel (0) target = $region13
    $region12: #{tpu_custom_call.1} parent=1 // pred_region
      _
    $region13: #{tpu_custom_call.1} parent=1 // pred_fallthru
      _
    // Predicated region
    $region14: #{tpu_custom_call.1} parent=1 // pred_check
      _
    $region15: #{tpu_custom_call.1} parent=1 // pred_check_branch
      %17 = sbr.rel (0) target = $region17
    $region16: #{tpu_custom_call.1} parent=1 // pred_region
      _
    $region17: #{tpu_custom_call.1} parent=1 // pred_fallthru
      _
    %v18 = vld [vmem:[%s1] sm:$0xff]
    %v19 = vld [vmem:[%s1 + $0x8] sm:$0xff]
    %v20 = vld [vmem:[%s1 + $0x10] sm:$0xff]
    %v21 = vld [vmem:[%s1 + $0x18] sm:$0xff]
    %v22 = vld [vmem:[%s1 + $0x20] sm:$0xff]
    %v23 = vld [vmem:[%s1 + $0x28] sm:$0xff]
    %v24 = vld [vmem:[%s1 + $0x30] sm:$0xff]
    %v25 = vld [vmem:[%s1 + $0x38] sm:$0xff]
    %v26 = vld [vmem:[%s1 + $0x40] sm:$0xff]
    %v27 = vld [vmem:[%s1 + $0x48] sm:$0xff]
    %v28 = vld [vmem:[%s1 + $0x50] sm:$0xff]
    %v29 = vld [vmem:[%s1 + $0x58] sm:$0xff]
    %v30 = vld [vmem:[%s0] sm:$0xff]
    %v31 = vld [vmem:[%s0 + $0x8] sm:$0xff]
    %v32 = vld [vmem:[%s0 + $0x10] sm:$0xff]
    %v33 = vld [vmem:[%s0 + $0x18] sm:$0xff]
    %v34 = vld [vmem:[%s2] sm:$0xff]
    %v35 = vld [vmem:[%s2 + $0x8] sm:$0xff]
    %v36 = vld [vmem:[%s2 + $0x10] sm:$0xff]
    %v37 = vld [vmem:[%s2 + $0x18] sm:$0xff]
    %v38 = vld [vmem:[%s2 + $0x20] sm:$0xff]
    %v39 = vld [vmem:[%s2 + $0x28] sm:$0xff]
    %v40 = vld [vmem:[%s2 + $0x30] sm:$0xff]
    %v41 = vld [vmem:[%s2 + $0x38] sm:$0xff]
    %v42 = vld [vmem:[%s2 + $0x40] sm:$0xff]
    %v43 = vld [vmem:[%s2 + $0x48] sm:$0xff]
    %v44 = vld [vmem:[%s2 + $0x50] sm:$0xff]
    %v45 = vld [vmem:[%s2 + $0x58] sm:$0xff]
    %47 = vset.pattern.permute.xlu0 0
    %48 = vperm.xlu0 %47, %v34
    %v49 = vpop.permute.xlu0 %48
    %52 = vset.pattern.permute.xlu0 0
    %53 = vperm.xlu0 %52, %v35
    %v54 = vpop.permute.xlu0 %53
    %57 = vset.pattern.permute.xlu0 0
    %58 = vperm.xlu0 %57, %v36
    %v59 = vpop.permute.xlu0 %58
    %62 = vset.pattern.permute.xlu0 0
    %63 = vperm.xlu0 %62, %v37
    %v64 = vpop.permute.xlu0 %63
    %67 = vset.pattern.permute.xlu0 0
    %68 = vperm.xlu0 %67, %v38
    %v69 = vpop.permute.xlu0 %68
    %72 = vset.pattern.permute.xlu0 0
    %73 = vperm.xlu0 %72, %v39
    %v74 = vpop.permute.xlu0 %73
    %77 = vset.pattern.permute.xlu0 0
    %78 = vperm.xlu0 %77, %v40
    %v79 = vpop.permute.xlu0 %78
    %82 = vset.pattern.permute.xlu0 0
    %83 = vperm.xlu0 %82, %v41
    %v84 = vpop.permute.xlu0 %83
    %87 = vset.pattern.permute.xlu0 0
    %88 = vperm.xlu0 %87, %v42
    %v89 = vpop.permute.xlu0 %88
    %92 = vset.pattern.permute.xlu0 0
    %93 = vperm.xlu0 %92, %v43
    %v94 = vpop.permute.xlu0 %93
    %97 = vset.pattern.permute.xlu0 0
    %98 = vperm.xlu0 %97, %v44
    %v99 = vpop.permute.xlu0 %98
    %102 = vset.pattern.permute.xlu0 0
    %103 = vperm.xlu0 %102, %v45
    %v104 = vpop.permute.xlu0 %103
    %vm106 = vcmask 261120
    %v108 = vsel %vm106, %v18, 0
    %v111 = vsel %vm106, %v19, 0
    %v114 = vsel %vm106, %v20, 0
    %v117 = vsel %vm106, %v21, 0
    %v120 = vsel %vm106, %v22, 0
    %v123 = vsel %vm106, %v23, 0
    %v126 = vsel %vm106, %v24, 0
    %v129 = vsel %vm106, %v25, 0
    %v132 = vsel %vm106, %v26, 0
    %v135 = vsel %vm106, %v27, 0
    %v138 = vsel %vm106, %v28, 0
    %v141 = vsel %vm106, %v29, 0
    %143 = vmatpush.msra.mxu0 0.0
    %144 = vmatpush.msra.mxu0 0.0
    %145 = vmatpush.msra.mxu0 0.0
    %146 = vmatpush.msra.mxu0 0.0
    %147 = vmatpush.msra.mxu0 0.0
    %148 = vmatpush.msra.mxu0 0.0
    %149 = vmatpush.msra.mxu0 0.0
    %150 = vmatpush.msra.mxu0 0.0
    %151 = vmatpush.msra.mxu0 0.0
    %152 = vmatpush.msra.mxu0 0.0
    %153 = vmatpush.msra.mxu0 0.0
    %154 = vmatpush.msra.mxu0 0.0
    %155 = vmatpush.msra.mxu0 %v33
    %156 = vmatpush.msra.mxu0 %v32
    %157 = vmatpush.msra.mxu0 %v31
    %158 = vmatpush.msra.mxu0 %v30
    %159 = vmatmul.f32.gmra.mxu0 %v108
    %v160 = vpop.f32.mrf.mxu0
    %v161 = vadd.f32 %v49, %v160
    %162 = vmatmul.f32.gmra.mxu0 %v111
    %v163 = vpop.f32.mrf.mxu0
    %v164 = vadd.f32 %v54, %v163
    %165 = vmatmul.f32.gmra.mxu0 %v114
    %v166 = vpop.f32.mrf.mxu0
    %v167 = vadd.f32 %v59, %v166
    %168 = vmatmul.f32.gmra.mxu0 %v117
    %v169 = vpop.f32.mrf.mxu0
    %v170 = vadd.f32 %v64, %v169
    %171 = vmatmul.f32.gmra.mxu0 %v120
    %v172 = vpop.f32.mrf.mxu0
    %v173 = vadd.f32 %v69, %v172
    %174 = vmatmul.f32.gmra.mxu0 %v123
    %v175 = vpop.f32.mrf.mxu0
    %v176 = vadd.f32 %v74, %v175
    %177 = vmatmul.f32.gmra.mxu0 %v126
    %v178 = vpop.f32.mrf.mxu0
    %v179 = vadd.f32 %v79, %v178
    %180 = vmatmul.f32.gmra.mxu0 %v129
    %v181 = vpop.f32.mrf.mxu0
    %v182 = vadd.f32 %v84, %v181
    %183 = vmatmul.f32.gmra.mxu0 %v132
    %v184 = vpop.f32.mrf.mxu0
    %v185 = vadd.f32 %v89, %v184
    %186 = vmatmul.f32.gmra.mxu0 %v135
    %v187 = vpop.f32.mrf.mxu0
    %v188 = vadd.f32 %v94, %v187
    %189 = vmatmul.f32.gmra.mxu0 %v138
    %v190 = vpop.f32.mrf.mxu0
    %v191 = vadd.f32 %v99, %v190
    %192 = vmatmul.f32.gmra.mxu0 %v141
    %v193 = vpop.f32.mrf.mxu0
    %v194 = vadd.f32 %v104, %v193
    %195 = vdwg.mxu0
    %v196 = vld [vmem:[%s3] sm:$0xff]
    %v197 = vld [vmem:[%s3 + $0x8] sm:$0xff]
    %v198 = vmul.f32 %v161, %v173
    %v199 = vmul.f32 %v164, %v173
    %v200 = vmul.f32 %v167, %v173
    %v201 = vmul.f32 %v170, %v173
    %v202 = vmul.f32 %v161, %v176
    %v203 = vmul.f32 %v164, %v176
    %v204 = vmul.f32 %v167, %v176
    %v205 = vmul.f32 %v170, %v176
    %v206 = vmul.f32 %v161, %v179
    %v207 = vmul.f32 %v164, %v179
    %v208 = vmul.f32 %v167, %v179
    %v209 = vmul.f32 %v170, %v179
    %v210 = vmul.f32 %v161, %v182
    %v211 = vmul.f32 %v164, %v182
    %v212 = vmul.f32 %v167, %v182
    %v213 = vmul.f32 %v170, %v182
    %214 = vmatpush.msra.mxu0 %v213
    %215 = vmatpush.msra.mxu0 %v212
    %216 = vmatpush.msra.mxu0 %v211
    %217 = vmatpush.msra.mxu0 %v210
    %218 = vmatpush.msra.mxu0 %v209
    %219 = vmatpush.msra.mxu0 %v208
    %220 = vmatpush.msra.mxu0 %v207
    %221 = vmatpush.msra.mxu0 %v206
    %222 = vmatpush.msra.mxu0 %v205
    %223 = vmatpush.msra.mxu0 %v204
    %224 = vmatpush.msra.mxu0 %v203
    %225 = vmatpush.msra.mxu0 %v202
    %226 = vmatpush.msra.mxu0 %v201
    %227 = vmatpush.msra.mxu0 %v200
    %228 = vmatpush.msra.mxu0 %v199
    %229 = vmatpush.msra.mxu0 %v198
    %230 = vmatmul.f32.gmra.mxu0 %v196
    %v231 = vpop.f32.mrf.mxu0
    %v232 = vadd.f32 0.0, %v231
    %233 = vmatmul.f32.gmra.mxu0 %v197
    %v234 = vpop.f32.mrf.mxu0
    %v235 = vadd.f32 0.0, %v234
    %236 = vdwg.mxu0
    %v238 = vrot.slane %v232, 4
    %v240 = vmax.f32 %v232, %v238
    %v241 = vmax.f32 %v240, %v235
    %v243 = vrot.slane %v235, 4
    %v245 = vmax.f32 %v241, %v243
    %v246 = vsub.f32 %v232, %v245
    %v247 = vmul.f32 %v246, 0.5
    %v249 = vrot.slane %v245, 4
    %v251 = vsub.f32 %v232, %v249
    %v252 = vmul.f32 %v251, 0.5
    %v253 = vsub.f32 %v235, %v245
    %v254 = vmul.f32 %v253, 0.5
    %v255 = vsub.f32 %v235, %v249
    %v256 = vmul.f32 %v255, 0.5
    %v258 = vrot.slane %v252, 4
    %v260 = vmax.f32 %v247, %v258
    %v261 = vmax.f32 %v260, %v254
    %v263 = vrot.slane %v256, 4
    %v265 = vmax.f32 %v261, %v263
    %v266 = vadd.f32 %v265, 0.0
    %v267 = vmul.f32 %v265, %v265
    %v268 = vadd.f32 %v267, 0.0
    %v269 = vmul.f32 %v266, %v266
    %v270 = vsub.f32 %v268, %v269
    %v271 = vsub.f32 1.0, %v270
    %v272 = vmax.f32 %v271, 0.0
    %v273 = vrsqrt.pop %v272
    %v274 = vmul.f32 %v273, %v272
    %v275 = vmul.f32 %v274, %v273
    %v276 = vmul.f32 0.5, %v275
    %v277 = vsub.f32 1.5, %v276
    %v278 = vmul.f32 %v273, %v277
    %v279 = vmul.f32 %v272, %v278
    %vm280 = vcmp.eq.f32.partialorder %v272, inf
    %v281 = vsel %vm280, %v272, %v279
    %vm282 = vcmp.eq.f32.partialorder %v272, 0.0
    %v283 = vand.u32 %v272, 2147483648
    %v284 = vsel %vm282, %v283, %v281
    %v285 = vsub.f32 %v266, %v284
    %vm286 = vcmp.le.f32.partialorder %v285, %v265
    %v287 = vsel %vm286, %v285, 0.0
    %vm288 = vcmp.eq.f32.partialorder %v247, %v265
    %v289 = vsel %vm288, -1e+30, %v247
    %v291 = vrot.slane %v265, 4
    %vm293 = vcmp.eq.f32.partialorder %v252, %v291
    %vm294 = vmxor %vm288, 1
    %v295 = vsel %vm294, 1, 0
    %v296 = vrot.slane %v295, 4
    %vm297 = vcmp.ne.s32.totalorder %v296, 0
    %vm298 = vmand %vm293, %vm297
    %v299 = vsel %vm298, -1e+30, %v252
    %v300 = vsel %vm298, 1, 0
    %v301 = vrot.slane %v300, 4
    %vm302 = vcmp.ne.s32.totalorder %v301, 0
    %vm303 = vmor %vm288, %vm302
    %vm304 = vcmp.eq.f32.partialorder %v254, %v265
    %vm305 = vmxor %vm303, 1
    %vm306 = vmand %vm304, %vm305
    %v307 = vsel %vm306, -1e+30, %v254
    %vm308 = vmor %vm303, %vm306
    %vm309 = vcmp.eq.f32.partialorder %v256, %v291
    %vm310 = vmxor %vm308, 1
    %v311 = vsel %vm310, 1, 0
    %v312 = vrot.slane %v311, 4
    %vm313 = vcmp.ne.s32.totalorder %v312, 0
    %vm314 = vmand %vm309, %vm313
    %v315 = vsel %vm314, -1e+30, %v256
    %v317 = vrot.slane %v299, 4
    %v319 = vmax.f32 %v289, %v317
    %v320 = vmax.f32 %v319, %v307
    %v322 = vrot.slane %v315, 4
    %v324 = vmax.f32 %v320, %v322
    %v325 = vadd.f32 %v266, %v324
    %v326 = vmul.f32 %v324, %v324
    %v327 = vadd.f32 %v268, %v326
    %v328 = vmul.f32 %v325, 0.5
    %v329 = vmul.f32 %v327, 0.5
    %v330 = vmul.f32 %v328, %v328
    %v331 = vsub.f32 %v329, %v330
    %v332 = vmul.f32 %v331, 2.0
    %v333 = vsub.f32 1.0, %v332
    %v334 = vmul.f32 %v333, 0.5
    %v335 = vmax.f32 %v334, 0.0
    %v336 = vrsqrt.pop %v335
    %v337 = vmul.f32 %v336, %v335
    %v338 = vmul.f32 %v337, %v336
    %v339 = vmul.f32 0.5, %v338
    %v340 = vsub.f32 1.5, %v339
    %v341 = vmul.f32 %v336, %v340
    %v342 = vmul.f32 %v335, %v341
    %vm343 = vcmp.eq.f32.partialorder %v335, inf
    %v344 = vsel %vm343, %v335, %v342
    %vm345 = vcmp.eq.f32.partialorder %v335, 0.0
    %v346 = vand.u32 %v335, 2147483648
    %v347 = vsel %vm345, %v346, %v344
    %v348 = vsub.f32 %v328, %v347
    %vm349 = vcmp.le.f32.partialorder %v348, %v324
    %v350 = vsel %vm349, %v348, %v287
    %vm351 = vcmp.eq.f32.partialorder %v289, %v324
    %v352 = vsel %vm351, -1e+30, %v289
    %v354 = vrot.slane %v324, 4
    %vm356 = vcmp.eq.f32.partialorder %v299, %v354
    %vm357 = vmxor %vm351, 1
    %v358 = vsel %vm357, 1, 0
    %v359 = vrot.slane %v358, 4
    %vm360 = vcmp.ne.s32.totalorder %v359, 0
    %vm361 = vmand %vm356, %vm360
    %v362 = vsel %vm361, -1e+30, %v299
    %v363 = vsel %vm361, 1, 0
    %v364 = vrot.slane %v363, 4
    %vm365 = vcmp.ne.s32.totalorder %v364, 0
    %vm366 = vmor %vm351, %vm365
    %vm367 = vcmp.eq.f32.partialorder %v307, %v324
    %vm368 = vmxor %vm366, 1
    %vm369 = vmand %vm367, %vm368
    %v370 = vsel %vm369, -1e+30, %v307
    %vm371 = vmor %vm366, %vm369
    %vm372 = vcmp.eq.f32.partialorder %v315, %v354
    %vm373 = vmxor %vm371, 1
    %v374 = vsel %vm373, 1, 0
    %v375 = vrot.slane %v374, 4
    %vm376 = vcmp.ne.s32.totalorder %v375, 0
    %vm377 = vmand %vm372, %vm376
    %v378 = vsel %vm377, -1e+30, %v315
    %v380 = vrot.slane %v362, 4
    %v382 = vmax.f32 %v352, %v380
    %v383 = vmax.f32 %v382, %v370
    %v385 = vrot.slane %v378, 4
    %v387 = vmax.f32 %v383, %v385
    %v388 = vadd.f32 %v325, %v387
    %v389 = vmul.f32 %v387, %v387
    %v390 = vadd.f32 %v327, %v389
    %v391 = vmul.f32 %v388, 0.33333334
    %v392 = vmul.f32 %v390, 0.33333334
    %v393 = vmul.f32 %v391, %v391
    %v394 = vsub.f32 %v392, %v393
    %v395 = vmul.f32 %v394, 3.0
    %v396 = vsub.f32 1.0, %v395
    %v397 = vmul.f32 %v396, 0.33333334
    %v398 = vmax.f32 %v397, 0.0
    %v399 = vrsqrt.pop %v398
    %v400 = vmul.f32 %v399, %v398
    %v401 = vmul.f32 %v400, %v399
    %v402 = vmul.f32 0.5, %v401
    %v403 = vsub.f32 1.5, %v402
    %v404 = vmul.f32 %v399, %v403
    %v405 = vmul.f32 %v398, %v404
    %vm406 = vcmp.eq.f32.partialorder %v398, inf
    %v407 = vsel %vm406, %v398, %v405
    %vm408 = vcmp.eq.f32.partialorder %v398, 0.0
    %v409 = vand.u32 %v398, 2147483648
    %v410 = vsel %vm408, %v409, %v407
    %v411 = vsub.f32 %v391, %v410
    %vm412 = vcmp.le.f32.partialorder %v411, %v387
    %v413 = vsel %vm412, %v411, %v350
    %vm414 = vcmp.eq.f32.partialorder %v352, %v387
    %v415 = vsel %vm414, -1e+30, %v352
    %v417 = vrot.slane %v387, 4
    %vm419 = vcmp.eq.f32.partialorder %v362, %v417
    %vm420 = vmxor %vm414, 1
    %v421 = vsel %vm420, 1, 0
    %v422 = vrot.slane %v421, 4
    %vm423 = vcmp.ne.s32.totalorder %v422, 0
    %vm424 = vmand %vm419, %vm423
    %v425 = vsel %vm424, -1e+30, %v362
    %v426 = vsel %vm424, 1, 0
    %v427 = vrot.slane %v426, 4
    %vm428 = vcmp.ne.s32.totalorder %v427, 0
    %vm429 = vmor %vm414, %vm428
    %vm430 = vcmp.eq.f32.partialorder %v370, %v387
    %vm431 = vmxor %vm429, 1
    %vm432 = vmand %vm430, %vm431
    %v433 = vsel %vm432, -1e+30, %v370
    %vm434 = vmor %vm429, %vm432
    %vm435 = vcmp.eq.f32.partialorder %v378, %v417
    %vm436 = vmxor %vm434, 1
    %v437 = vsel %vm436, 1, 0
    %v438 = vrot.slane %v437, 4
    %vm439 = vcmp.ne.s32.totalorder %v438, 0
    %vm440 = vmand %vm435, %vm439
    %v441 = vsel %vm440, -1e+30, %v378
    %v443 = vrot.slane %v425, 4
    %v445 = vmax.f32 %v415, %v443
    %v446 = vmax.f32 %v445, %v433
    %v448 = vrot.slane %v441, 4
    %v450 = vmax.f32 %v446, %v448
    %v451 = vadd.f32 %v388, %v450
    %v452 = vmul.f32 %v450, %v450
    %v453 = vadd.f32 %v390, %v452
    %v454 = vmul.f32 %v451, 0.25
    %v455 = vmul.f32 %v453, 0.25
    %v456 = vmul.f32 %v454, %v454
    %v457 = vsub.f32 %v455, %v456
    %v458 = vmul.f32 %v457, 4.0
    %v459 = vsub.f32 1.0, %v458
    %v460 = vmul.f32 %v459, 0.25
    %v461 = vmax.f32 %v460, 0.0
    %v462 = vrsqrt.pop %v461
    %v463 = vmul.f32 %v462, %v461
    %v464 = vmul.f32 %v463, %v462
    %v465 = vmul.f32 0.5, %v464
    %v466 = vsub.f32 1.5, %v465
    %v467 = vmul.f32 %v462, %v466
    %v468 = vmul.f32 %v461, %v467
    %vm469 = vcmp.eq.f32.partialorder %v461, inf
    %v470 = vsel %vm469, %v461, %v468
    %vm471 = vcmp.eq.f32.partialorder %v461, 0.0
    %v472 = vand.u32 %v461, 2147483648
    %v473 = vsel %vm471, %v472, %v470
    %v474 = vsub.f32 %v454, %v473
    %vm475 = vcmp.le.f32.partialorder %v474, %v450
    %v476 = vsel %vm475, %v474, %v413
    %v477 = vsub.f32 %v247, %v476
    %v478 = vmax.f32 %v477, 0.0
    %v479 = vmul.f32 %v478, %v478
    %v481 = vrot.slane %v476, 4
    %v483 = vsub.f32 %v252, %v481
    %v484 = vmax.f32 %v483, 0.0
    %v485 = vmul.f32 %v484, %v484
    %v486 = vsub.f32 %v254, %v476
    %v487 = vmax.f32 %v486, 0.0
    %v488 = vmul.f32 %v487, %v487
    %v489 = vsub.f32 %v256, %v481
    %v490 = vmax.f32 %v489, 0.0
    %v491 = vmul.f32 %v490, %v490
    %v492 = vperm.slane %v479, 0
    %v493 = vmul.f32 %v492, %v185
    %v494 = vperm.slane %v485, 4
    %v495 = vmul.f32 %v494, %v188
    %v496 = vadd.f32 %v493, %v495
    %v497 = vperm.slane %v488, 0
    %v498 = vmul.f32 %v497, %v191
    %v499 = vadd.f32 %v496, %v498
    %v500 = vperm.slane %v491, 4
    %v501 = vmul.f32 %v500, %v194
    %v502 = vadd.f32 %v499, %v501
    %503 = vst [vmem:[#allocation2] sm:$0xff] %v502
    %v504 = vperm.slane %v479, 1
    %v505 = vmul.f32 %v504, %v185
    %v506 = vperm.slane %v485, 5
    %v507 = vmul.f32 %v506, %v188
    %v508 = vadd.f32 %v505, %v507
    %v509 = vperm.slane %v488, 1
    %v510 = vmul.f32 %v509, %v191
    %v511 = vadd.f32 %v508, %v510
    %v512 = vperm.slane %v491, 5
    %v513 = vmul.f32 %v512, %v194
    %v514 = vadd.f32 %v511, %v513
    %515 = vst [vmem:[#allocation2 + $0x8] sm:$0xff] %v514
    %v516 = vperm.slane %v479, 2
    %v517 = vmul.f32 %v516, %v185
    %v518 = vperm.slane %v485, 6
    %v519 = vmul.f32 %v518, %v188
    %v520 = vadd.f32 %v517, %v519
    %v521 = vperm.slane %v488, 2
    %v522 = vmul.f32 %v521, %v191
    %v523 = vadd.f32 %v520, %v522
    %v524 = vperm.slane %v491, 6
    %v525 = vmul.f32 %v524, %v194
    %v526 = vadd.f32 %v523, %v525
    %527 = vst [vmem:[#allocation2 + $0x10] sm:$0xff] %v526
    %v528 = vperm.slane %v479, 3
    %v529 = vmul.f32 %v528, %v185
    %v530 = vperm.slane %v485, 7
    %v531 = vmul.f32 %v530, %v188
    %v532 = vadd.f32 %v529, %v531
    %v533 = vperm.slane %v488, 3
    %v534 = vmul.f32 %v533, %v191
    %v535 = vadd.f32 %v532, %v534
    %v536 = vperm.slane %v491, 7
    %v537 = vmul.f32 %v536, %v194
    %v538 = vadd.f32 %v535, %v537
    %539 = vst [vmem:[#allocation2 + $0x18] sm:$0xff] %v538
    // Predicated region
    $region18: #{tpu_custom_call.1} parent=1 // pred_check
      _
    $region19: #{tpu_custom_call.1} parent=1 // pred_check_branch
      %541 = sbr.rel (0) target = $region21
    $region20: #{tpu_custom_call.1} parent=1 // pred_region
      %543 = vsyncadd [#allocation3], 0
      %s544 = sshll.u32 [#allocation2], 4
      %s545 = int_to_ptr.vmem [resolvable:$true] %s544
      %s546 = sshll.u32 %s4, 4
      %s547 = int_to_ptr.hbm [resolvable:$true] %s546
      %552 = dma.vmem_to_hbm [thread:$0]  %s545, 512, %s547, [#allocation3], 128, 128, 8
    $region21: #{tpu_custom_call.1} parent=1 // pred_fallthru
      _
    // Predicated region
    $region22: #{tpu_custom_call.1} parent=1 // pred_check
      _
    $region23: #{tpu_custom_call.1} parent=1 // pred_check_branch
      %554 = sbr.rel (0) target = $region25
    $region24: #{tpu_custom_call.1} parent=1 // pred_region
      %556 = dma.done [#allocation3], 512
    $region25: #{tpu_custom_call.1} parent=1 // pred_fallthru
      _
    %557 = vsyncpa [#allocation3], 1

</llo_original>
